<compile_context>
chip_gen: v5e
topology: v5e:2x2
jax: 0.10.0
libtpu: 0.0.40
codegen_flags: <defaults>
</compile_context>

<pallas_src>
import functools

import jax
import jax.numpy as jnp
from jax.experimental import pallas as pl
from jax.experimental.pallas import tpu as pltpu


def _attention_probs(q_ref, k_ref, scale):
    # q_ref: (BH, Lq, D), k_ref: (BH, Lk, D) -> softmax probs (BH, Lq, Lk), f32.
    s = jnp.einsum("bqd,bkd->bqk", q_ref[...], k_ref[...],
                   preferred_element_type=jnp.float32)
    s = s * scale
    m = jnp.max(s, axis=-1, keepdims=True)
    e = jnp.exp(s - m)
    denom = jnp.sum(e, axis=-1, keepdims=True)
    # approx=True -> EUP vrcp slot, co-issues with VPU/MXU work.
    return e * pl.reciprocal(denom, approx=True)


def _store_lane_dense(probs, v_ref, o_ref):
    # PV matmul in the value dtype (bf16-native on the MXU if inputs are bf16),
    # accumulate in f32.
    out = jnp.einsum("bqk,bkv->bqv", probs.astype(v_ref.dtype), v_ref[...],
                     preferred_element_type=jnp.float32)
    bh = out.shape[0]
    # Fold heads into the lane dimension: (BH, Lq, Dv) -> (Lq, BH*Dv) so the
    # store is a single lane-dense slab (8 x 128 for the demo shapes).
    folded = jnp.concatenate([out[b] for b in range(bh)], axis=-1)
    o_ref[...] = folded.astype(o_ref.dtype)


def _sdpa_kernel(q_ref, k_ref, v_ref, o_ref, *, scale, p_drop):
    probs = _attention_probs(q_ref, k_ref, scale)
    if p_drop >= 1.0:
        # p == 1 -> every probability dropped -> zeros (matches torch).
        probs = jnp.zeros_like(probs)
    _store_lane_dense(probs, v_ref, o_ref)


def _sdpa_dropout_kernel(seed_ref, q_ref, k_ref, v_ref, o_ref, *, scale, p_drop):
    probs = _attention_probs(q_ref, k_ref, scale)
    # TODO(synk): TPU PRNG mask cannot bit-match torch's dropout RNG stream.
    pltpu.prng_seed(seed_ref[0])
    bits = pltpu.prng_random_bits(probs.shape)   # one bulk draw for all heads
    ubits = bits if bits.dtype == jnp.uint32 else pltpu.bitcast(bits, jnp.uint32)
    u = (ubits >> jnp.uint32(8)).astype(jnp.float32) * (1.0 / (1 << 24))
    keep = (u >= p_drop).astype(jnp.float32)
    probs = probs * keep * (1.0 / (1.0 - p_drop))
    _store_lane_dense(probs, v_ref, o_ref)


def sdpa_dropout(query, key, value, scale_factor, dropout_p, seed=0):
    B, H, Lq, D = query.shape
    Lk = key.shape[2]
    Dv = value.shape[3]
    BH = B * H

    q = query.reshape(BH, Lq, D)
    k = key.reshape(BH, Lk, D)
    v = value.reshape(BH, Lk, Dv)

    vmem = pl.BlockSpec(memory_space=pltpu.MemorySpace.VMEM)
    out_shape = jax.ShapeDtypeStruct((Lq, BH * Dv), jnp.float32)
    p = float(dropout_p)
    scale = float(scale_factor)

    if 0.0 < p < 1.0:
        kernel = functools.partial(_sdpa_dropout_kernel, scale=scale, p_drop=p)
        seed_arr = jnp.asarray([seed], dtype=jnp.int32)
        folded = pl.pallas_call(
            kernel,
            out_shape=out_shape,
            in_specs=[pl.BlockSpec(memory_space=pltpu.MemorySpace.SMEM),
                      vmem, vmem, vmem],
            out_specs=vmem,
        )(seed_arr, q, k, v)
    else:
        # p == 0 (identity dropout) or p >= 1 (all-dropped): no PRNG, no seed arg.
        kernel = functools.partial(_sdpa_kernel, scale=scale, p_drop=p)
        folded = pl.pallas_call(
            kernel,
            out_shape=out_shape,
            in_specs=[vmem, vmem, vmem],
            out_specs=vmem,
        )(q, k, v)

    # Un-fold the lane-dense (Lq, BH*Dv) slab back to (B, H, Lq, Dv).
    out = folded.reshape(Lq, BH, Dv).transpose(1, 0, 2)
    return out.reshape(B, H, Lq, Dv)


def _reference(query, key, value, scale_factor, dropout_p):
    s = jnp.einsum("bhqd,bhkd->bhqk", query, key) * scale_factor
    p = jax.nn.softmax(s, axis=-1)
    if dropout_p >= 1.0:
        p = jnp.zeros_like(p)
    return jnp.einsum("bhqk,bhkv->bhqv", p, value)


if __name__ == "__main__":
    # The PyTorch script's literal shapes (q (1,5,1,64), k (1,6,1,200),
    # v (1,5,1,200)) do not broadcast in torch.matmul; use small, mutually
    # consistent SDPA shapes instead.
    B, H, Lq, Lk, D, Dv = 1, 4, 8, 8, 32, 32
    dropout_p = 1.0      # as in the PyTorch script
    scale_factor = 1.0   # as in the PyTorch script

    k0, k1, k2 = jax.random.split(jax.random.PRNGKey(0), 3)
    query = jax.random.normal(k0, (B, H, Lq, D), dtype=jnp.float32)
    key = jax.random.normal(k1, (B, H, Lk, D), dtype=jnp.float32)
    value = jax.random.normal(k2, (B, H, Lk, Dv), dtype=jnp.float32)

    out = jax.block_until_ready(
        sdpa_dropout(query, key, value, scale_factor, dropout_p))
    ref = _reference(query, key, value, scale_factor, dropout_p)
    assert out.shape == (B, H, Lq, Dv)
    assert jnp.allclose(out, ref, atol=1e-5, rtol=1e-5)

    # Sanity-check the no-dropout math path too (relaxed tolerance because of
    # the EUP approximate reciprocal in the softmax denominator).
    out0 = jax.block_until_ready(
        sdpa_dropout(query, key, value, scale_factor, 0.0))
    ref0 = _reference(query, key, value, scale_factor, 0.0)
    assert jnp.allclose(out0, ref0, atol=2e-2, rtol=2e-2)

    print("KERNEL_OK")
</pallas_src>

<mosaic_0001>
module attributes {stable_mosaic.version = 11 : i64} {
  func.func @_sdpa_kernel(%arg0: memref<4x8x32xf32, #tpu.memory_space<vmem>>, %arg1: memref<4x8x32xf32, #tpu.memory_space<vmem>>, %arg2: memref<4x8x32xf32, #tpu.memory_space<vmem>>, %arg3: memref<8x128xf32, #tpu.memory_space<vmem>>) attributes {dimension_semantics = [], scalar_prefetch = 0 : i64, scratch_operands = 0 : i64, tpu.core_type = #tpu.core_type<tc>} {
    %cst = arith.constant 0.000000e+00 : f32
    %0 = vector.broadcast %cst : f32 to vector<4x8x8xf32>
    %c0 = arith.constant 0 : index
    %c0_0 = arith.constant 0 : index
    %c0_1 = arith.constant 0 : index
    %1 = vector.load %arg2[%c0, %c0_0, %c0_1] : memref<4x8x32xf32, #tpu.memory_space<vmem>>, vector<4x8x32xf32>
    "tpu.trace_start"() <{level = 10 : i32, message = "bqk,bkv->bqv"}> : () -> ()
    %cst_2 = arith.constant dense<0.000000e+00> : vector<4x8x32xf32>
    %2 = tpu.matmul %0, %1, %cst_2 {dimension_numbers = #tpu.dot_dimension_numbers<[2], [1], [1], [2], [0, 0, 0, 1, 1, 2], [0], [0]>} : vector<4x8x8xf32>, vector<4x8x32xf32>, vector<4x8x32xf32> -> vector<4x8x32xf32>
    "tpu.trace_stop"() : () -> ()
    %3 = vector.extract_strided_slice %2 {offsets = [0, 0, 0], sizes = [1, 8, 32], strides = [1, 1, 1]} : vector<4x8x32xf32> to vector<1x8x32xf32>
    %4 = vector.shape_cast %3 : vector<1x8x32xf32> to vector<8x32xf32>
    %5 = vector.extract_strided_slice %2 {offsets = [1, 0, 0], sizes = [1, 8, 32], strides = [1, 1, 1]} : vector<4x8x32xf32> to vector<1x8x32xf32>
    %6 = vector.shape_cast %5 : vector<1x8x32xf32> to vector<8x32xf32>
    %7 = vector.extract_strided_slice %2 {offsets = [2, 0, 0], sizes = [1, 8, 32], strides = [1, 1, 1]} : vector<4x8x32xf32> to vector<1x8x32xf32>
    %8 = vector.shape_cast %7 : vector<1x8x32xf32> to vector<8x32xf32>
    %9 = vector.extract_strided_slice %2 {offsets = [3, 0, 0], sizes = [1, 8, 32], strides = [1, 1, 1]} : vector<4x8x32xf32> to vector<1x8x32xf32>
    %10 = vector.shape_cast %9 : vector<1x8x32xf32> to vector<8x32xf32>
    %11 = tpu.concatenate %4, %6, %8, %10 in 1 : vector<8x32xf32>, vector<8x32xf32>, vector<8x32xf32>, vector<8x32xf32> -> vector<8x128xf32>
    %c0_3 = arith.constant 0 : index
    %c0_4 = arith.constant 0 : index
    %12 = vector.load %arg3[%c0_3, %c0_4] : memref<8x128xf32, #tpu.memory_space<vmem>>, vector<8x128xf32>
    tpu.vector_store %arg3[%c0_3, %c0_4], %11 {strides = array<i32>} : memref<8x128xf32, #tpu.memory_space<vmem>>, vector<8x128xf32>,
    return
  }
}

</mosaic_0001>

<llo_original>
// kernel: tpu_custom_call.1
$region0: #{tpu_custom_call.1}
  #allocation0 [shape = 'u32[]', space=smem, size = 0x4, offset = 0x4, fixed_abs, tag = 'smem constant byte address 0x4 - core index']
  #allocation1 [shape = 'u32[72,128]{1,0:T(1,128)}', space=vmem, size = 0x9000, scoped, tag = 'internal scratch']
  %s0 = inlined_call_operand.hbm [shape: f32[4,8,32], index: 0, kind: input, shape index: {}]
  %s1 = inlined_call_operand.hbm [shape: f32[4,8,32], index: 1, kind: input, shape index: {}]
  %s2 = inlined_call_operand.hbm [shape: f32[4,8,32], index: 2, kind: input, shape index: {}]
  %s3 = inlined_call_operand.hbm [shape: f32[8,128], index: 3, kind: output, shape index: {}]
  %s4 = sld [smem:[#allocation0]]
  $region34: #{tpu_custom_call.1} parent=0
    _
  %s6 = ssub.s32 1, %s4
  %s7 = scalar_select 0, %s6, %s4
  $region1: #{tpu_custom_call.1} parent=0
    #allocation2 [shape = 'u8[16384]{0}', space=vmem, size = 0x4000, scoped, tag = 'input window, operand 0, single buffered']
    #allocation3 [shape = 's32[1]{0}', space=sflag, size = 0x4, scoped, tag = 'scoped memory for tpu_custom_call.1']
    #allocation4 [shape = 's32[1]{0}', space=sflag, size = 0x4, scoped, tag = 'scoped memory for tpu_custom_call.1']
    #allocation5 [shape = 'u8[16384]{0}', space=vmem, size = 0x4000, scoped, tag = 'input window, operand 1, single buffered']
    #allocation6 [shape = 's32[1]{0}', space=sflag, size = 0x4, scoped, tag = 'scoped memory for tpu_custom_call.1']
    #allocation7 [shape = 'u8[16384]{0}', space=vmem, size = 0x4000, scoped, tag = 'input window, operand 2, single buffered']
    #allocation8 [shape = 'u8[4096]{0}', space=vmem, size = 0x1000, scoped, tag = 'output window, operand 0, single buffered']
    %8 = vsyncpa [#allocation3], 0
    %9 = vsyncpa [#allocation6], 0
    %10 = vsyncpa [#allocation4], 0
    // Predicated region
    $region2: #{tpu_custom_call.1} parent=1 // pred_check
      _
    $region3: #{tpu_custom_call.1} parent=1 // pred_check_branch
      %12 = sbr.rel (0) target = $region5
    $region4: #{tpu_custom_call.1} parent=1 // pred_region
      %14 = vsyncadd [#allocation3], 0
      %s15 = sshll.u32 %s0, 4
      %s16 = int_to_ptr.hbm [resolvable:$true] %s15
      %s17 = sshll.u32 [#allocation2], 4
      %s18 = int_to_ptr.vmem [resolvable:$true] %s17
      %23 = dma.hbm_to_vmem [thread:$0]  %s16, 512, %s18, [#allocation3], 128, 128, 8
    $region5: #{tpu_custom_call.1} parent=1 // pred_fallthru
      _
    // Predicated region
    $region6: #{tpu_custom_call.1} parent=1 // pred_check
      _
    $region7: #{tpu_custom_call.1} parent=1 // pred_check_branch
      %25 = sbr.rel (0) target = $region9
    $region8: #{tpu_custom_call.1} parent=1 // pred_region
      %27 = vsyncadd [#allocation6], 0
      %s28 = sshll.u32 %s1, 4
      %s29 = int_to_ptr.hbm [resolvable:$true] %s28
      %s30 = sshll.u32 [#allocation5], 4
      %s31 = int_to_ptr.vmem [resolvable:$true] %s30
      %36 = dma.hbm_to_vmem [thread:$0]  %s29, 512, %s31, [#allocation6], 128, 128, 8
    $region9: #{tpu_custom_call.1} parent=1 // pred_fallthru
      _
    // Predicated region
    $region10: #{tpu_custom_call.1} parent=1 // pred_check
      _
    $region11: #{tpu_custom_call.1} parent=1 // pred_check_branch
      %38 = sbr.rel (0) target = $region13
    $region12: #{tpu_custom_call.1} parent=1 // pred_region
      %40 = vsyncadd [#allocation6], 0
      %s41 = sshll.u32 %s2, 4
      %s42 = int_to_ptr.hbm [resolvable:$true] %s41
      %s43 = sshll.u32 [#allocation7], 4
      %s44 = int_to_ptr.vmem [resolvable:$true] %s43
      %49 = dma.hbm_to_vmem [thread:$0]  %s42, 512, %s44, [#allocation6], 128, 128, 8
    $region13: #{tpu_custom_call.1} parent=1 // pred_fallthru
      _
    // Predicated region
    $region14: #{tpu_custom_call.1} parent=1 // pred_check
      _
    $region15: #{tpu_custom_call.1} parent=1 // pred_check_branch
      %51 = sbr.rel (0) target = $region17
    $region16: #{tpu_custom_call.1} parent=1 // pred_region
      %53 = dma.done [#allocation3], 512
    $region17: #{tpu_custom_call.1} parent=1 // pred_fallthru
      _
    // Predicated region
    $region18: #{tpu_custom_call.1} parent=1 // pred_check
      _
    $region19: #{tpu_custom_call.1} parent=1 // pred_check_branch
      %55 = sbr.rel (0) target = $region21
    $region20: #{tpu_custom_call.1} parent=1 // pred_region
      %57 = dma.done [#allocation6], 512
    $region21: #{tpu_custom_call.1} parent=1 // pred_fallthru
      _
    // Predicated region
    $region22: #{tpu_custom_call.1} parent=1 // pred_check
      _
    $region23: #{tpu_custom_call.1} parent=1 // pred_check_branch
      %59 = sbr.rel (0) target = $region25
    $region24: #{tpu_custom_call.1} parent=1 // pred_region
      %61 = dma.done [#allocation6], 512
    $region25: #{tpu_custom_call.1} parent=1 // pred_fallthru
      _
    %v62 = vld [vmem:[#allocation7] sm:$0xff]
    %v63 = vld [vmem:[#allocation7 + $0x8] sm:$0xff]
    %v64 = vld [vmem:[#allocation7 + $0x10] sm:$0xff]
    %v65 = vld [vmem:[#allocation7 + $0x18] sm:$0xff]
    %vm66 = vcmask 64512
    %v68 = vsel %vm66, 0.0, 0
    %70 = vmatpush.msra.mxu0 0.0
    %71 = vmatpush.msra.mxu0 0.0
    %72 = vmatpush.msra.mxu0 0.0
    %73 = vmatpush.msra.mxu0 0.0
    %74 = vmatpush.msra.mxu0 0.0
    %75 = vmatpush.msra.mxu0 0.0
    %76 = vmatpush.msra.mxu0 0.0
    %77 = vmatpush.msra.mxu0 0.0
    %78 = vmatpush.msra.mxu0 0.0
    %79 = vmatpush.msra.mxu0 0.0
    %80 = vmatpush.msra.mxu0 0.0
    %81 = vmatpush.msra.mxu0 0.0
    %82 = vmatpush.msra.mxu0 0.0
    %83 = vmatpush.msra.mxu0 0.0
    %84 = vmatpush.msra.mxu0 0.0
    %85 = vmatpush.msra.mxu0 %v62
    %86 = vmatmul.f32.gmra.mxu0 %v68
    %v87 = vpop.f32.mrf.mxu0
    %v88 = vadd.f32 0.0, %v87
    %89 = vdwg.mxu0
    %90 = vmatpush.msra.mxu0 0.0
    %91 = vmatpush.msra.mxu0 0.0
    %92 = vmatpush.msra.mxu0 0.0
    %93 = vmatpush.msra.mxu0 0.0
    %94 = vmatpush.msra.mxu0 0.0
    %95 = vmatpush.msra.mxu0 0.0
    %96 = vmatpush.msra.mxu0 0.0
    %97 = vmatpush.msra.mxu0 0.0
    %98 = vmatpush.msra.mxu0 0.0
    %99 = vmatpush.msra.mxu0 0.0
    %100 = vmatpush.msra.mxu0 0.0
    %101 = vmatpush.msra.mxu0 0.0
    %102 = vmatpush.msra.mxu0 0.0
    %103 = vmatpush.msra.mxu0 0.0
    %104 = vmatpush.msra.mxu0 0.0
    %105 = vmatpush.msra.mxu0 %v63
    %106 = vmatmul.f32.gmra.mxu0 %v68
    %v107 = vpop.f32.mrf.mxu0
    %v108 = vadd.f32 0.0, %v107
    %109 = vdwg.mxu0
    %110 = vmatpush.msra.mxu0 0.0
    %111 = vmatpush.msra.mxu0 0.0
    %112 = vmatpush.msra.mxu0 0.0
    %113 = vmatpush.msra.mxu0 0.0
    %114 = vmatpush.msra.mxu0 0.0
    %115 = vmatpush.msra.mxu0 0.0
    %116 = vmatpush.msra.mxu0 0.0
    %117 = vmatpush.msra.mxu0 0.0
    %118 = vmatpush.msra.mxu0 0.0
    %119 = vmatpush.msra.mxu0 0.0
    %120 = vmatpush.msra.mxu0 0.0
    %121 = vmatpush.msra.mxu0 0.0
    %122 = vmatpush.msra.mxu0 0.0
    %123 = vmatpush.msra.mxu0 0.0
    %124 = vmatpush.msra.mxu0 0.0
    %125 = vmatpush.msra.mxu0 %v64
    %126 = vmatmul.f32.gmra.mxu0 %v68
    %v127 = vpop.f32.mrf.mxu0
    %v128 = vadd.f32 0.0, %v127
    %129 = vdwg.mxu0
    %130 = vmatpush.msra.mxu0 0.0
    %131 = vmatpush.msra.mxu0 0.0
    %132 = vmatpush.msra.mxu0 0.0
    %133 = vmatpush.msra.mxu0 0.0
    %134 = vmatpush.msra.mxu0 0.0
    %135 = vmatpush.msra.mxu0 0.0
    %136 = vmatpush.msra.mxu0 0.0
    %137 = vmatpush.msra.mxu0 0.0
    %138 = vmatpush.msra.mxu0 0.0
    %139 = vmatpush.msra.mxu0 0.0
    %140 = vmatpush.msra.mxu0 0.0
    %141 = vmatpush.msra.mxu0 0.0
    %142 = vmatpush.msra.mxu0 0.0
    %143 = vmatpush.msra.mxu0 0.0
    %144 = vmatpush.msra.mxu0 0.0
    %145 = vmatpush.msra.mxu0 %v65
    %146 = vmatmul.f32.gmra.mxu0 %v68
    %v147 = vpop.f32.mrf.mxu0
    %v148 = vadd.f32 0.0, %v147
    %149 = vdwg.mxu0
    %151 = vrot.lane.b32.xlu0 %v108, 32
    %v152 = vpop.permute.xlu0 %151
    %155 = vrot.lane.b32.xlu0 %v128, 64
    %v156 = vpop.permute.xlu0 %155
    %159 = vrot.lane.b32.xlu0 %v148, 96
    %v160 = vpop.permute.xlu0 %159
    %vm162 = vcmask 261120
    %v163 = vsel %vm162, %v88, %v152
    %vm164 = vcmask 523264
    %v165 = vsel %vm164, %v163, %v156
    %vm166 = vcmask 785408
    %v167 = vsel %vm166, %v165, %v160
    %168 = vst [vmem:[#allocation8] sm:$0xff] %v167
    // Predicated region
    $region26: #{tpu_custom_call.1} parent=1 // pred_check
      _
    $region27: #{tpu_custom_call.1} parent=1 // pred_check_branch
      %170 = sbr.rel (0) target = $region29
    $region28: #{tpu_custom_call.1} parent=1 // pred_region
      %172 = vsyncadd [#allocation4], 0
      %s174 = sshll.u32 [#allocation8], 4
      %s175 = int_to_ptr.vmem [resolvable:$true] %s174
      %s176 = sshll.u32 %s3, 4
      %s177 = int_to_ptr.hbm [resolvable:$true] %s176
      %179 = dma.vmem_to_hbm [thread:$0]  %s175, 128, %s177, [#allocation4]
    $region29: #{tpu_custom_call.1} parent=1 // pred_fallthru
      _
    // Predicated region
    $region30: #{tpu_custom_call.1} parent=1 // pred_check
      _
    $region31: #{tpu_custom_call.1} parent=1 // pred_check_branch
      %181 = sbr.rel (0) target = $region33
    $region32: #{tpu_custom_call.1} parent=1 // pred_region
      %183 = dma.done [#allocation4], 128
    $region33: #{tpu_custom_call.1} parent=1 // pred_fallthru
      _
    %184 = vsyncpa [#allocation3], 1
    %185 = vsyncpa [#allocation6], 1
    %186 = vsyncpa [#allocation4], 1

</llo_original>
